<compile_context>
chip_gen: v7x
topology: tpu7x:2x2x1
jax: 0.10.0
libtpu: 0.0.40
codegen_flags: <defaults>
</compile_context>

<pallas_src>
import functools

import jax
import jax.numpy as jnp
from jax.experimental import pallas as pl
from jax.experimental.pallas import tpu as pltpu

_NCORES = 2        # leading "parallel" grid axis: both TCs on v7x, serial elsewhere
_CHUNK = 2048      # lane-chunk width of the in-kernel loop (bounds live ranges)


def _accumulate_chunk(x_raw, t, base_col, n_valid, acc_ref, *, alpha, gamma):
    """Adds the focal-loss contribution of one (C, L) lane chunk into acc_ref (1, L)."""
    x = x_raw.astype(jnp.float32)                                # (C, L)
    # numerically stable log-sum-exp over the class (sublane) axis
    m = jnp.max(x, axis=0, keepdims=True)                        # (1, L)
    z = x - m                                                    # (C, L)
    sum_e = jnp.sum(jnp.exp(z), axis=0, keepdims=True)           # (1, L)
    # true-class shifted logit via a one-hot sublane mask (no dynamic gather on TPU)
    cls = jax.lax.broadcasted_iota(jnp.int32, x.shape, 0)        # (C, L)
    z_t = jnp.sum(jnp.where(cls == t, z, 0.0), axis=0, keepdims=True)   # (1, L)

    ce = jnp.log(sum_e) - z_t                                    # (1, L) per-sample CE
    pt = jnp.exp(-ce)                                            # EUP exp (slot has slack)
    w = jnp.maximum(1.0 - pt, 0.0)                               # clamp pt rounding > 1

    g = float(gamma)
    if g == int(g) and 0 <= int(g) <= 8:
        wg = jnp.ones_like(w)
        for _ in range(int(g)):                                  # strength-reduced pow (VPU only)
            wg = wg * w
    else:
        # NB: at pt == 1 this yields tiny**gamma rather than exactly 0; harmless because
        # ce ~ 0 there, so the product is ~0 either way.
        wg = jnp.exp(g * jnp.log(jnp.maximum(w, jnp.finfo(jnp.float32).tiny)))

    f = alpha * wg * ce                                          # (1, L)

    # select (not multiply) so inf/NaN from garbage tail columns cannot leak in
    col = jax.lax.broadcasted_iota(jnp.int32, f.shape, 1) + base_col
    acc_ref[...] += jnp.where(col < n_valid, f, 0.0)


def _focal_loss_kernel(nvalid_ref, x_ref, t_ref, out_ref, acc_ref, *,
                       alpha, gamma, tile_n, chunk):
    ci = pl.program_id(0)                  # parallel (core) axis
    si = pl.program_id(1)                  # arbitrary (accumulation) axis
    n_valid = nvalid_ref[0]

    @pl.when(si == 0)
    def _():
        acc_ref[...] = jnp.zeros_like(acc_ref)

    # UNclamped global first column of this block.  The index_map clamp only affects
    # which data gets DMA'd; masking must use the true position so a duplicated block
    # on an over-provisioned parallel slice contributes exactly zero.
    base_col = (ci * pl.num_programs(1) + si) * tile_n

    n_chunks = tile_n // chunk
    if n_chunks == 1:
        _accumulate_chunk(x_ref[...], t_ref[...], base_col, n_valid, acc_ref,
                          alpha=alpha, gamma=gamma)
    else:
        @pl.loop(0, n_chunks)
        def _(j):
            off = pl.multiple_of(j * chunk, chunk)
            _accumulate_chunk(x_ref[:, pl.ds(off, chunk)],
                              t_ref[:, pl.ds(off, chunk)],
                              base_col + off, n_valid, acc_ref,
                              alpha=alpha, gamma=gamma)

    @pl.when(si == pl.num_programs(1) - 1)
    def _():
        partial = jnp.sum(acc_ref[...]) / n_valid.astype(jnp.float32)
        row = jax.lax.broadcasted_iota(jnp.int32, out_ref.shape, 0)
        lane = jax.lax.broadcasted_iota(jnp.int32, out_ref.shape, 1)
        out_ref[...] = jnp.where((row == 0) & (lane == 0), partial, 0.0)


def _plan(n, c, max_tile_n=None):
    """Pick (tile_n, chunk, vmem_limit_bytes) from the chip's VMEM capacity."""
    try:
        vmem_cap = int(pltpu.get_tpu_info().vmem_capacity_bytes)
    except Exception:
        vmem_cap = 64 << 20                        # conservative (v7x-sized) fallback
    vmem_limit = min(vmem_cap // 2, 64 << 20)      # 32 MiB on v7x, 64 MiB on v5e/v6e
    budget = vmem_limit // 2                       # double-buffered pipeline inputs

    cpad = -(-c // 8) * 8                          # logits sublanes padded to 8
    bytes_per_col = 2 * cpad * 4 + 2 * 8 * 4       # 2x logits bufs + 2x (padded) target bufs
    tn = budget // bytes_per_col
    if max_tile_n is not None:
        tn = min(tn, int(max_tile_n))
    tn = max(128, min(tn, 128 * 1024))
    tn = (tn // 128) * 128

    if n < 128:
        tn = chunk = n                             # one full-extent block (block == array dim)
    else:
        tn = min(tn, (n // 128) * 128)             # block start always inside the array
        if tn > _CHUNK:
            tn = (tn // _CHUNK) * _CHUNK
            chunk = _CHUNK
        else:
            chunk = tn

    # Large-C guard: if the 128-column floor overshoots the budget, raise the scoped
    # VMEM limit instead of silently compiling an over-budget kernel.
    # TODO(synk): for C in the many thousands, tile the class axis (2-D grid carrying
    # partial max / sum-exp in scratch) instead of relying on a bigger limit.
    need = bytes_per_col * tn + 12 * cpad * chunk * 4 + 8 * chunk * 4
    vmem_limit = max(vmem_limit, min(need + (2 << 20), vmem_cap))
    return tn, chunk, int(vmem_limit)


def focal_loss(inputs, targets, alpha=0.25, gamma=2, *, max_tile_n=None):
    """Pallas TPU focal loss.

    inputs:  (N, C) float32/bfloat16 logits
    targets: (N,)   integer class indices
    returns: scalar float32 (mean focal loss)
    """
    n, num_classes = inputs.shape
    tile_n, chunk, vmem_limit = _plan(n, num_classes, max_tile_n)
    nb = pl.cdiv(n, tile_n)                       # column blocks
    spc = pl.cdiv(nb, _NCORES)                    # blocks per parallel slice

    # lane-dense layout: samples on lanes, classes on sublanes (C << 128 typical).
    x_t = jnp.transpose(inputs)                                   # (C, N)
    t2d = targets.astype(jnp.int32).reshape(1, n)                 # (1, N)
    n_arr = jnp.array([n], dtype=jnp.int32)                       # scalar-prefetch arg

    kernel = functools.partial(_focal_loss_kernel, alpha=float(alpha),
                               gamma=float(gamma), tile_n=tile_n, chunk=chunk)

    def col_block(ci, si, n_ref):
        # clamp so an over-provisioned last parallel slice never DMAs out of bounds;
        # its columns are masked out in-kernel via the unclamped index.
        return (0, jnp.minimum(ci * spc + si, nb - 1))

    out = pl.pallas_call(
        kernel,
        out_shape=jax.ShapeDtypeStruct((_NCORES * 8, 128), jnp.float32),
        grid_spec=pltpu.PrefetchScalarGridSpec(
            num_scalar_prefetch=1,
            grid=(_NCORES, spc),
            in_specs=[
                pl.BlockSpec((num_classes, tile_n), col_block),
                pl.BlockSpec((1, tile_n), col_block),
            ],
            out_specs=pl.BlockSpec((8, 128), lambda ci, si, n_ref: (ci, 0)),
            scratch_shapes=[pltpu.VMEM((1, chunk), jnp.float32)],
        ),
        compiler_params=pltpu.CompilerParams(
            dimension_semantics=("parallel", "arbitrary"),
            vmem_limit_bytes=vmem_limit,
        ),
    )(n_arr, x_t, t2d)
    # per-core partial means sit at out[8*ci, 0]; everything else is zero.
    return jnp.sum(out)


def _reference(inputs, targets, alpha=0.25, gamma=2):
    # pure-JAX reference matching nn.CrossEntropyLoss(reduction='none') + focal weighting
    logp = jax.nn.log_softmax(inputs.astype(jnp.float32), axis=-1)
    ce = -jnp.take_along_axis(logp, targets.reshape(-1, 1).astype(jnp.int32), axis=-1)[:, 0]
    pt = jnp.exp(-ce)
    return jnp.mean(alpha * (1.0 - pt) ** gamma * ce)


if __name__ == "__main__":
    key = jax.random.PRNGKey(0)
    k1, k2, k3, k4 = jax.random.split(key, 4)

    # small demo consistent with the module: 8 samples, 4 classes
    N, C = 8, 4
    logits = jax.random.normal(k1, (N, C), dtype=jnp.float32)
    targets = jax.random.randint(k2, (N,), 0, C, dtype=jnp.int32)
    out = jax.block_until_ready(focal_loss(logits, targets, alpha=0.25, gamma=2))
    ref = _reference(logits, targets, 0.25, 2)
    assert jnp.allclose(out, ref, rtol=1e-4, atol=1e-6), (out, ref)

    # larger case exercising the multi-block accumulator, the in-kernel lane-chunk loop,
    # the clamped duplicate block on the parallel axis and the unpadded tail mask.
    N2, C2 = 9000, 5
    logits2 = jax.random.normal(k3, (N2, C2), dtype=jnp.float32)
    targets2 = jax.random.randint(k4, (N2,), 0, C2, dtype=jnp.int32)
    out2 = jax.block_until_ready(
        focal_loss(logits2, targets2, alpha=0.25, gamma=2, max_tile_n=4096))
    ref2 = _reference(logits2, targets2, 0.25, 2)
    assert jnp.allclose(out2, ref2, rtol=1e-4, atol=1e-6), (out2, ref2)

    print("KERNEL_OK")
</pallas_src>

<mosaic_0001>
module attributes {stable_mosaic.version = 11 : i64} {
  func.func @_focal_loss_kernel(%arg0: i32, %arg1: i32, %arg2: memref<1xi32, #tpu.memory_space<smem>>, %arg3: memref<4x8xf32, #tpu.memory_space<vmem>>, %arg4: memref<1x8xi32, #tpu.memory_space<vmem>>, %arg5: memref<8x128xf32, #tpu.memory_space<vmem>>, %arg6: memref<1x8xf32, #tpu.memory_space<vmem>>) attributes {dimension_semantics = [#tpu.dimension_semantics<parallel>, #tpu.dimension_semantics<arbitrary>], iteration_bounds = array<i64: 2, 1>, scalar_prefetch = 1 : i64, scratch_operands = 1 : i64, tpu.core_type = #tpu.core_type<tc>, window_params = [{transform_indices = @transform_0, window_bounds = array<i64: 4, 8>}, {transform_indices = @transform_1, window_bounds = array<i64: 1, 8>}, {transform_indices = @transform_2, window_bounds = array<i64: 8, 128>}]} {
    %c0 = arith.constant 0 : index
    %0 = memref.load %arg2[%c0] : memref<1xi32, #tpu.memory_space<smem>>
    %c0_i32 = arith.constant 0 : i32
    %1 = arith.cmpi eq, %arg1, %c0_i32 : i32
    %2 = arith.extui %1 : i1 to i32
    %c0_i32_0 = arith.constant 0 : i32
    %3 = arith.cmpi ne, %2, %c0_i32_0 : i32
    scf.if %3 {
      %cst_20 = arith.constant 0.000000e+00 : f32
      %51 = vector.broadcast %cst_20 : f32 to vector<1x8xf32>
      %c0_21 = arith.constant 0 : index
      %c0_22 = arith.constant 0 : index
      %52 = vector.load %arg6[%c0_21, %c0_22] : memref<1x8xf32, #tpu.memory_space<vmem>>, vector<1x8xf32>
      tpu.vector_store %arg6[%c0_21, %c0_22], %51 {strides = array<i32>} : memref<1x8xf32, #tpu.memory_space<vmem>>, vector<1x8xf32>,
    } else {
    }
    %c1_i32 = arith.constant 1 : i32
    %4 = arith.muli %arg0, %c1_i32 : i32
    %5 = arith.addi %4, %arg1 : i32
    %c8_i32 = arith.constant 8 : i32
    %6 = arith.muli %5, %c8_i32 : i32
    %c0_1 = arith.constant 0 : index
    %c0_2 = arith.constant 0 : index
    %7 = vector.load %arg3[%c0_1, %c0_2] : memref<4x8xf32, #tpu.memory_space<vmem>>, vector<4x8xf32>
    %c0_3 = arith.constant 0 : index
    %c0_4 = arith.constant 0 : index
    %8 = vector.load %arg4[%c0_3, %c0_4] : memref<1x8xi32, #tpu.memory_space<vmem>>, vector<1x8xi32>
    %cst = arith.constant dense<0xFF800000> : vector<8xf32>
    %9 = vector.multi_reduction <maximumf>, %7, %cst [0] : vector<4x8xf32> to vector<8xf32>
    %10 = vector.shape_cast %9 : vector<8xf32> to vector<1x8xf32>
    %11 = vector.broadcast %10 : vector<1x8xf32> to vector<4x8xf32>
    %12 = arith.subf %7, %11 : vector<4x8xf32>
    %13 = math.exp %12 : vector<4x8xf32>
    %cst_5 = arith.constant dense<0.000000e+00> : vector<8xf32>
    %14 = vector.multi_reduction <add>, %13, %cst_5 [0] : vector<4x8xf32> to vector<8xf32>
    %15 = vector.shape_cast %14 : vector<8xf32> to vector<1x8xf32>
    %16 = tpu.iota {dimensions = array<i32: 0>} : vector<4x8xi32>
    %17 = vector.broadcast %8 : vector<1x8xi32> to vector<4x8xi32>
    %18 = arith.cmpi eq, %16, %17 : vector<4x8xi32>
    %cst_6 = arith.constant 0.000000e+00 : f32
    %19 = vector.broadcast %cst_6 : f32 to vector<4x8xf32>
    %20 = arith.select %18, %12, %19 : vector<4x8xi1>, vector<4x8xf32>
    %cst_7 = arith.constant dense<0.000000e+00> : vector<8xf32>
    %21 = vector.multi_reduction <add>, %20, %cst_7 [0] : vector<4x8xf32> to vector<8xf32>
    %22 = vector.shape_cast %21 : vector<8xf32> to vector<1x8xf32>
    %23 = math.log %15 : vector<1x8xf32>
    %24 = arith.subf %23, %22 : vector<1x8xf32>
    %cst_8 = arith.constant 0.000000e+00 : f32
    %25 = vector.broadcast %cst_8 : f32 to vector<1x8xf32>
    %26 = arith.subf %25, %24 : vector<1x8xf32>
    %27 = math.exp %26 : vector<1x8xf32>
    %cst_9 = arith.constant 1.000000e+00 : f32
    %28 = vector.broadcast %cst_9 : f32 to vector<1x8xf32>
    %29 = arith.subf %28, %27 : vector<1x8xf32>
    %cst_10 = arith.constant 0.000000e+00 : f32
    %30 = vector.broadcast %cst_10 : f32 to vector<1x8xf32>
    %31 = arith.maximumf %29, %30 : vector<1x8xf32>
    %cst_11 = arith.constant 1.000000e+00 : f32
    %32 = vector.broadcast %cst_11 : f32 to vector<1x8xf32>
    %33 = arith.mulf %32, %31 : vector<1x8xf32>
    %34 = arith.mulf %33, %31 : vector<1x8xf32>
    %cst_12 = arith.constant 2.500000e-01 : f32
    %35 = vector.broadcast %cst_12 : f32 to vector<1x8xf32>
    %36 = arith.mulf %35, %34 : vector<1x8xf32>
    %37 = arith.mulf %36, %24 : vector<1x8xf32>
    %38 = tpu.iota {dimensions = array<i32: 1>} : vector<1x8xi32>
    %39 = vector.broadcast %6 : i32 to vector<1x8xi32>
    %40 = arith.addi %38, %39 : vector<1x8xi32>
    %c0_13 = arith.constant 0 : index
    %c0_14 = arith.constant 0 : index
    %41 = vector.load %arg6[%c0_13, %c0_14] : memref<1x8xf32, #tpu.memory_space<vmem>>, vector<1x8xf32>
    %42 = vector.broadcast %0 : i32 to vector<1x8xi32>
    %43 = arith.cmpi slt, %40, %42 : vector<1x8xi32>
    %cst_15 = arith.constant 0.000000e+00 : f32
    %44 = vector.broadcast %cst_15 : f32 to vector<1x8xf32>
    %45 = arith.select %43, %37, %44 : vector<1x8xi1>, vector<1x8xf32>
    %46 = arith.addf %41, %45 : vector<1x8xf32>
    %c0_16 = arith.constant 0 : index
    %c0_17 = arith.constant 0 : index
    %47 = vector.load %arg6[%c0_16, %c0_17] : memref<1x8xf32, #tpu.memory_space<vmem>>, vector<1x8xf32>
    tpu.vector_store %arg6[%c0_16, %c0_17], %46 {strides = array<i32>} : memref<1x8xf32, #tpu.memory_space<vmem>>, vector<1x8xf32>,
    %c0_i32_18 = arith.constant 0 : i32
    %48 = arith.cmpi eq, %arg1, %c0_i32_18 : i32
    %49 = arith.extui %48 : i1 to i32
    %c0_i32_19 = arith.constant 0 : i32
    %50 = arith.cmpi ne, %49, %c0_i32_19 : i32
    scf.if %50 {
      %c0_20 = arith.constant 0 : index
      %c0_21 = arith.constant 0 : index
      %51 = vector.load %arg6[%c0_20, %c0_21] : memref<1x8xf32, #tpu.memory_space<vmem>>, vector<1x8xf32>
      %52 = vector.shape_cast %51 : vector<1x8xf32> to vector<1x1x8xf32>
      %cst_22 = arith.constant dense<0.000000e+00> : vector<1xf32>
      %53 = vector.multi_reduction <add>, %52, %cst_22 [1, 2] : vector<1x1x8xf32> to vector<1xf32>
      %54 = vector.shape_cast %53 : vector<1xf32> to vector<1x1x1xf32>
      %55 = vector.extract %54[0, 0, 0] : f32 from vector<1x1x1xf32>
      %56 = arith.sitofp %0 : i32 to f32
      %57 = arith.divf %55, %56 : f32
      %58 = tpu.iota {dimensions = array<i32: 0>} : vector<8x128xi32>
      %59 = tpu.iota {dimensions = array<i32: 1>} : vector<8x128xi32>
      %c0_i32_23 = arith.constant 0 : i32
      %60 = vector.broadcast %c0_i32_23 : i32 to vector<8x128xi32>
      %61 = arith.cmpi eq, %58, %60 : vector<8x128xi32>
      %c0_i32_24 = arith.constant 0 : i32
      %62 = vector.broadcast %c0_i32_24 : i32 to vector<8x128xi32>
      %63 = arith.cmpi eq, %59, %62 : vector<8x128xi32>
      %64 = arith.andi %61, %63 : vector<8x128xi1>
      %cst_25 = arith.constant 0.000000e+00 : f32
      %65 = vector.broadcast %57 : f32 to vector<8x128xf32>
      %66 = vector.broadcast %cst_25 : f32 to vector<8x128xf32>
      %67 = arith.select %64, %65, %66 : vector<8x128xi1>, vector<8x128xf32>
      %c0_26 = arith.constant 0 : index
      %c0_27 = arith.constant 0 : index
      %68 = vector.load %arg5[%c0_26, %c0_27] : memref<8x128xf32, #tpu.memory_space<vmem>>, vector<8x128xf32>
      tpu.vector_store %arg5[%c0_26, %c0_27], %67 {strides = array<i32>} : memref<8x128xf32, #tpu.memory_space<vmem>>, vector<8x128xf32>,
    } else {
    }
    return
  }
  func.func @transform_0(%arg0: i32, %arg1: i32, %arg2: memref<1xi32, #tpu.memory_space<smem>>) -> (i32, i32) {
    %c1_i32 = arith.constant 1 : i32
    %0 = arith.muli %arg0, %c1_i32 : i32
    %1 = arith.addi %0, %arg1 : i32
    %c0_i32 = arith.constant 0 : i32
    %2 = arith.minsi %1, %c0_i32 : i32
    %c0_i32_0 = arith.constant 0 : i32
    %c0_i32_1 = arith.constant 0 : i32
    return %c0_i32_0, %2 : i32, i32
  }
  func.func @transform_1(%arg0: i32, %arg1: i32, %arg2: memref<1xi32, #tpu.memory_space<smem>>) -> (i32, i32) {
    %c1_i32 = arith.constant 1 : i32
    %0 = arith.muli %arg0, %c1_i32 : i32
    %1 = arith.addi %0, %arg1 : i32
    %c0_i32 = arith.constant 0 : i32
    %2 = arith.minsi %1, %c0_i32 : i32
    %c0_i32_0 = arith.constant 0 : i32
    %c0_i32_1 = arith.constant 0 : i32
    return %c0_i32_0, %2 : i32, i32
  }
  func.func @transform_2(%arg0: i32, %arg1: i32, %arg2: memref<1xi32, #tpu.memory_space<smem>>) -> (i32, i32) {
    %c0_i32 = arith.constant 0 : i32
    %c0_i32_0 = arith.constant 0 : i32
    return %arg0, %c0_i32 : i32, i32
  }
}

</mosaic_0001>

<llo_original>
// kernel: tpu_custom_call.1
$region0: #{tpu_custom_call.1}
  #allocation0 [shape = 'u32[]', space=smem, size = 0x4, offset = 0x4, fixed_abs, tag = 'smem constant byte address 0x4 - core index']
  #allocation1 [shape = 'u32[144,128]{1,0:T(1,128)}', space=vmem, size = 0x12000, scoped, tag = 'internal scratch']
  #allocation2 [shape = 'f32[1,8]{1,0:T(1,128)}', space=vmem, size = 0x200, scoped, tag = 'scratch operand']
  #allocation3 [shape = 's32[1]{0}', space=sflag, size = 0x4, scoped, tag = 'scoped memory for tpu_custom_call.1']
  #allocation4 [shape = 's32[1]{0:T(128)S(6)}', space=smem, size = 0x200, scoped, tag = 'prefetched SMEM operand 0']
  %s0 = inlined_call_operand.<no memory space> [shape: s32[1], index: 0, kind: input, shape index: {}]
  %s1 = inlined_call_operand.hbm [shape: f32[4,8], index: 1, kind: input, shape index: {}]
  %s2 = inlined_call_operand.vmem [shape: s32[1,8], index: 2, kind: input, shape index: {}]
  %s3 = inlined_call_operand.hbm [shape: f32[16,128], index: 3, kind: output, shape index: {}]
  %s4 = sld [smem:[#allocation0]]
  $region53: #{tpu_custom_call.1} parent=0
    _
  %s6 = ssub.s32 1, %s4
  %s7 = scalar_select 0, %s6, %s4
  %8 = sst [smem:[#allocation4]] %s0
  $region1: #{tpu_custom_call.1} parent=0
    #allocation5 [shape = 'u8[4096]{0}', space=vmem, size = 0x1000, scoped, tag = 'input window, operand 1']
    #allocation6 [shape = 's32[2]{0}', space=sflag, size = 0x8, scoped, tag = 'scoped memory for tpu_custom_call.1']
    #allocation7 [shape = 's32[2]{0}', space=sflag, size = 0x8, scoped, tag = 'scoped memory for tpu_custom_call.1']
    #allocation8 [shape = 'u8[8192]{0}', space=vmem, size = 0x2000, scoped, tag = 'output window, operand 0']
    %9 = vsyncpa [#allocation6], 0
    %s10 = scalar_lea.sflag [#allocation6], 1
    %11 = vsyncpa %s10, 0
    %12 = vsyncpa [#allocation7], 0
    %s13 = scalar_lea.sflag [#allocation7], 1
    %14 = vsyncpa %s13, 0
    loop: start=0, step=1, limit=4
    $region2: #{tpu_custom_call.1} parent=1 // loop_pre_header
      _
    $region3: #{tpu_custom_call.1} parent=1 // loop_header
      %s16 = sphi 0, %s20
      %p17 = scmp.ge.s32.totalorder %s16, 4
      %s23 = sphi 0, %s35
      %s24 = sphi 0, %s31
      %s25 = sphi 0, %s23
      %s26 = sphi 0, %s24
      %s27 = sphi 0, %s25
      %s28 = sphi 0, %s26
      %s44 = sphi 0, %s46
      %s47 = sphi 0, %s44
      %s48 = sphi 0, %s47
      %s64 = sphi 0, %s48
      %s76 = sphi 0, %s78
      %s79 = sphi 0, %s76
      %s80 = sphi 0, %s79
      %s96 = sphi 0, %s80
      %s102 = sphi 0, %s104
      %s105 = sphi 0, %s102
      %s106 = sphi 0, %s105
      %s122 = sphi 0, %s106
    $region4: #{tpu_custom_call.1} parent=1 // loop_header_branch
      %19 = sbr.rel (%p17) target = $region8
    $region5: #{tpu_custom_call.1} parent=1 // loop_body
      %s21 = ssub.s32 %s16, 1
      %s22 = ssub.s32 %s16, 2
      %s29 = sadd.s32 1, %s24
      %p30 = scmp.ge.s32.totalorder %s29, 1
      %s31 = scalar_select %p30, 0, %s29
      %s32 = sadd.s32 1, %s23
      %s33 = scalar_select %p30, %s32, %s23
      %p34 = scmp.ge.s32.totalorder %s33, 2
      %s35 = scalar_select %p34, 0, %s33
      %s36 = sadd.s32 %s23, %s24
      %p37 = scmp.lt.s32.totalorder %s36, 0
      %s38 = scalar_select %p37, %s36, 0
      %s39 = sadd.s32 %s35, %s31
      %p40 = scmp.lt.s32.totalorder %s39, 0
      %s41 = scalar_select %p40, %s39, 0
      %s42 = ssub.s32 %s38, %s41
      %p43 = scmp.eq.s32.totalorder %s42, 0
      %s45 = sadd.s32 %s44, 1
      %s46 = scalar_select %p43, %s44, %s45
      %p49 = pneg %p43
      %p50 = scmp.eq.s32.totalorder %s16, 1
      %p51 = por %p49, %p50
      %p52 = scmp.ne.s32.totalorder %s44, %s47
      %p53 = scmp.eq.s32.totalorder %s16, 0
      %p54 = por %p52, %p53
      %p55 = scmp.ne.s32.totalorder %s44, %s47
      %p56 = scmp.eq.s32.totalorder %s21, 1
      %p57 = por %p55, %p56
      %p58 = scmp.ne.s32.totalorder %s47, %s48
      %p59 = scmp.eq.s32.totalorder %s21, 0
      %p60 = por %p58, %p59
      %p61 = scmp.ne.s32.totalorder %s47, %s48
      %p62 = scmp.eq.s32.totalorder %s22, 1
      %p63 = por %p61, %p62
      %p65 = scmp.ne.s32.totalorder %s48, %s64
      %p66 = scmp.eq.s32.totalorder %s22, 0
      %p67 = por %p65, %p66
      %s68 = sadd.s32 %s23, %s24
      %p69 = scmp.lt.s32.totalorder %s68, 0
      %s70 = scalar_select %p69, %s68, 0
      %s71 = sadd.s32 %s35, %s31
      %p72 = scmp.lt.s32.totalorder %s71, 0
      %s73 = scalar_select %p72, %s71, 0
      %s74 = ssub.s32 %s70, %s73
      %p75 = scmp.eq.s32.totalorder %s74, 0
      %s77 = sadd.s32 %s76, 1
      %s78 = scalar_select %p75, %s76, %s77
      %p81 = pneg %p75
      %p82 = scmp.eq.s32.totalorder %s16, 1
      %p83 = por %p81, %p82
      %p84 = scmp.ne.s32.totalorder %s76, %s79
      %p85 = scmp.eq.s32.totalorder %s16, 0
      %p86 = por %p84, %p85
      %p87 = scmp.ne.s32.totalorder %s76, %s79
      %p88 = scmp.eq.s32.totalorder %s21, 1
      %p89 = por %p87, %p88
      %p90 = scmp.ne.s32.totalorder %s79, %s80
      %p91 = scmp.eq.s32.totalorder %s21, 0
      %p92 = por %p90, %p91
      %p93 = scmp.ne.s32.totalorder %s79, %s80
      %p94 = scmp.eq.s32.totalorder %s22, 1
      %p95 = por %p93, %p94
      %p97 = scmp.ne.s32.totalorder %s80, %s96
      %p98 = scmp.eq.s32.totalorder %s22, 0
      %p99 = por %p97, %p98
      %s100 = ssub.s32 %s23, %s35
      %p101 = scmp.eq.s32.totalorder %s100, 0
      %s103 = sadd.s32 %s102, 1
      %s104 = scalar_select %p101, %s102, %s103
      %p107 = pneg %p101
      %p108 = scmp.eq.s32.totalorder %s16, 1
      %p109 = por %p107, %p108
      %p110 = scmp.ne.s32.totalorder %s102, %s105
      %p111 = scmp.eq.s32.totalorder %s16, 0
      %p112 = por %p110, %p111
      %p113 = scmp.ne.s32.totalorder %s102, %s105
      %p114 = scmp.eq.s32.totalorder %s21, 1
      %p115 = por %p113, %p114
      %p116 = scmp.ne.s32.totalorder %s105, %s106
      %p117 = scmp.eq.s32.totalorder %s21, 0
      %p118 = por %p116, %p117
      %p119 = scmp.ne.s32.totalorder %s105, %s106
      %p120 = scmp.eq.s32.totalorder %s22, 1
      %p121 = por %p119, %p120
      %p123 = scmp.ne.s32.totalorder %s106, %s122
      %p124 = scmp.eq.s32.totalorder %s22, 0
      %p125 = por %p123, %p124
      %p126 = scmp.le.s32.totalorder 1, %s16
      %p127 = scmp.lt.s32.totalorder %s16, 3
      %p128 = pnand %p126, %p127
      %p129 = pneg %p128
      // Predicated region
      $region9: #{tpu_custom_call.1} parent=5 // pred_check
        _
      $region10: #{tpu_custom_call.1} parent=5 // pred_check_branch
        %131 = sbr.rel (%p128) target = $region12
      $region11: #{tpu_custom_call.1} parent=5 // pred_region
        %s132 = ssub.s32 %s16, 1
      $region12: #{tpu_custom_call.1} parent=5 // pred_fallthru
        _
      %p133 = scmp.lt.s32.totalorder %s16, 2
      // Predicated region
      $region13: #{tpu_custom_call.1} parent=5 // pred_check
        %p134 = pneg %p133
      $region14: #{tpu_custom_call.1} parent=5 // pred_check_branch
        %136 = sbr.rel (%p134) target = $region16
      $region15: #{tpu_custom_call.1} parent=5 // pred_region
        // Predicated region
        $region17: #{tpu_custom_call.1} parent=15 // pred_check
          %p137 = pneg %p54
        $region18: #{tpu_custom_call.1} parent=15 // pred_check_branch
          %139 = sbr.rel (%p137) target = $region20
        $region19: #{tpu_custom_call.1} parent=15 // pred_region
          %s140 = sand.u32 %s44, 1
          %s141 = scalar_lea.sflag [#allocation6], %s140
          %s142 = sand.u32 %s44, 1
          %s143 = smul.addr %s142, 4
          %s144 = scalar_lea.vmem [#allocation5], %s143
          %s145 = sadd.s32 %s23, %s24
          %p146 = scmp.lt.s32.totalorder %s145, 0
          %s147 = scalar_select %p146, %s145, 0
          %s149 = ssub.s32 64, 64
          %150 = vsyncadd %s141, %s149
          %s151 = smul.addr %s147, 64
          %s152 = scalar_lea.hbm %s1, %s151
          %s154 = sshll.u32 %s144, 4
          %s155 = int_to_ptr.vmem [resolvable:$true] %s154
          %157 = dma.hbm_to_vmem [thread:$0]  %s152, 64, %s155, %s141
        $region20: #{tpu_custom_call.1} parent=15 // pred_fallthru
          _
        // Predicated region
        $region21: #{tpu_custom_call.1} parent=15 // pred_check
          %p158 = pneg %p86
        $region22: #{tpu_custom_call.1} parent=15 // pred_check_branch
          %160 = sbr.rel (%p158) target = $region24
        $region23: #{tpu_custom_call.1} parent=15 // pred_region
          %s161 = sadd.s32 %s23, %s24
          %p162 = scmp.lt.s32.totalorder %s161, 0
          %s163 = scalar_select %p162, %s161, 0
          %p164 = scmp.lt.s32.totalorder %s163, 0
          %s165 = scalar_select %p164, %s163, 0
          %s166 = scalar_lea.vmem %s2, %s165
          %s167 = sadd.s32 %s23, %s24
          %p168 = scmp.lt.s32.totalorder %s167, 0
          %s169 = scalar_select %p168, %s167, 0
        $region24: #{tpu_custom_call.1} parent=15 // pred_fallthru
          _
      $region16: #{tpu_custom_call.1} parent=5 // pred_fallthru
        _
      %p170 = scmp.le.s32.totalorder 1, %s16
      %p171 = scmp.lt.s32.totalorder %s16, 3
      %p172 = pnand %p170, %p171
      %p173 = pneg %p172
      // Predicated region
      $region25: #{tpu_custom_call.1} parent=5 // pred_check
        _
      $region26: #{tpu_custom_call.1} parent=5 // pred_check_branch
        %175 = sbr.rel (%p172) target = $region28
      $region27: #{tpu_custom_call.1} parent=5 // pred_region
        %s176 = ssub.s32 %s16, 1
        %s177 = sand.u32 %s47, 1
        %s178 = scalar_lea.sflag [#allocation6], %s177
        %s179 = sand.u32 %s47, 1
        %s180 = smul.addr %s179, 4
        %s181 = scalar_lea.vmem [#allocation5], %s180
        // Predicated region
        $region29: #{tpu_custom_call.1} parent=27 // pred_check
          %p182 = pneg %p60
        $region30: #{tpu_custom_call.1} parent=27 // pred_check_branch
          %184 = sbr.rel (%p182) target = $region32
        $region31: #{tpu_custom_call.1} parent=27 // pred_region
          %185 = dma.done %s178, 64
        $region32: #{tpu_custom_call.1} parent=27 // pred_fallthru
          _
        %s186 = sand.u32 %s47, 1
        %s187 = scalar_lea.sflag [#allocation6], %s186
        %s188 = sand.u32 %s47, 1
        %s189 = smul.addr %s188, 4
        %s190 = scalar_lea.vmem [#allocation5], %s189
        %p191 = pneg %p60
        %p192 = pneg %p57
        %s193 = sadd.s32 %s25, %s26
        %p194 = scmp.lt.s32.totalorder %s193, 0
        %s195 = scalar_select %p194, %s193, 0
        %p196 = scmp.lt.s32.totalorder %s195, 0
        %s197 = scalar_select %p196, %s195, 0
        %s198 = scalar_lea.vmem %s2, %s197
        %p199 = pneg %p92
        %p200 = pneg %p89
        %p201 = pneg %p118
        %p202 = pneg %p115
        %s203 = sand.u32 %s105, 1
        %s204 = scalar_lea.sflag [#allocation7], %s203
        %s205 = sand.u32 %s105, 1
        %s206 = smul.addr %s205, 8
        %s207 = scalar_lea.vmem [#allocation8], %s206
        %s208 = sadd.s32 %s25, %s26
        %p209 = scmp.lt.s32.totalorder %s208, 0
        %s210 = scalar_select %p209, %s208, 0
        %s211 = sadd.s32 %s25, %s26
        %p212 = scmp.lt.s32.totalorder %s211, 0
        %s213 = scalar_select %p212, %s211, 0
        %p214 = scmp.lt.s32.totalorder %s213, 0
        %s215 = scalar_select %p214, %s213, 0
        %s216 = scalar_lea.vmem %s2, %s215
        %s217 = sadd.s32 %s25, %s26
        %p218 = scmp.lt.s32.totalorder %s217, 0
        %s219 = scalar_select %p218, %s217, 0
        %s220 = sld [smem:[#allocation4]]
        %p221 = scmp.eq.s32.totalorder %s26, 0
        // Predicated region
        $region33: #{tpu_custom_call.1} parent=27 // pred_check
          %p222 = pneg %p221
        $region34: #{tpu_custom_call.1} parent=27 // pred_check_branch
          %224 = sbr.rel (%p222) target = $region36
        $region35: #{tpu_custom_call.1} parent=27 // pred_region
          %vm225 = vcmask 57344
          %226 = vst.msk [vmem:[#allocation2] sm:$0x1] %vm225, 0.0
        $region36: #{tpu_custom_call.1} parent=27 // pred_fallthru
          _
        %s227 = sadd.s32 %s25, %s26
        %s228 = smul.u32 %s227, 8
        %v229 = vld [vmem:[%s181] sm:$0xf]
        %v230 = vld [vmem:[%s216] sm:$0x1]
        %vm231 = vcmask 60416
        %v232 = vsel %vm231, %v229, -inf
        %v233 = vrot.slane %v232, 4
        %v234 = vmax.f32 %v232, %v233
        %v235 = vrot.slane %v234, 2
        %v236 = vmax.f32 %v234, %v235
        %v237 = vrot.slane %v236, 1
        %v238 = vmax.f32 %v236, %v237
        %v239 = vsub.f32 %v229, %v238
        %v240 = vmul.f32 %v239, 1.442695
        %v241 = vpow.pop %v240
        %v242 = vsel %vm231, %v241, 0.0
        %v243 = vrot.slane %v242, 4
        %v244 = vadd.f32 %v242, %v243
        %v245 = vrot.slane %v244, 2
        %v246 = vadd.f32 %v244, %v245
        %v247 = vrot.slane %v246, 1
        %v248 = vadd.f32 %v246, %v247
        %v249 = vlaneseq
        %v250 = vshrl.u32 %v249, 7
        %v251 = vlaneseq
        %v252 = vshrl.u32 %v251, 7
        %v253 = vsub.s32 0, %v252
        %v254 = vrot.slane %v230, %v253
        %vm255 = vcmp.eq.s32.totalorder %v250, %v254
        %v256 = vsel %vm255, %v239, 0.0
        %v257 = vsel %vm231, %v256, 0.0
        %v258 = vrot.slane %v257, 4
        %v259 = vadd.f32 %v257, %v258
        %v260 = vrot.slane %v259, 2
        %v261 = vadd.f32 %v259, %v260
        %v262 = vrot.slane %v261, 1
        %v263 = vadd.f32 %v261, %v262
        %v264 = vlog2.pop %v248
        %v265 = vmul.f32 %v264, 0.6931472
        %v266 = vsub.f32 %v265, %v263
        %v267 = vsub.f32 0.0, %v266
        %v268 = vmul.f32 %v267, 1.442695
        %v269 = vpow.pop %v268
        %v270 = vsub.f32 1.0, %v269
        %v271 = vmax.f32 %v270, 0.0
        %v272 = vmul.f32 %v271, %v271
        %v273 = vmul.f32 %v272, 0.25
        %v274 = vmul.f32 %v273, %v266
        %v275 = vlaneseq
        %v276 = vand.u32 %v275, 127
        %v277 = vstv %s228
        %v278 = vadd.s32 %v276, %v277
        %v279 = vld [vmem:[#allocation2] sm:$0x1]
        %v280 = vstv %s220
        %vm281 = vcmp.lt.s32.totalorder %v278, %v280
        %v282 = vsel %vm281, %v274, 0.0
        %v283 = vadd.f32 %v279, %v282
        %vm284 = vcmask 57344
        %285 = vst.msk [vmem:[#allocation2] sm:$0x1] %vm284, %v283
        // Predicated region
        $region37: #{tpu_custom_call.1} parent=27 // pred_check
          %p286 = pneg %p221
        $region38: #{tpu_custom_call.1} parent=27 // pred_check_branch
          %288 = sbr.rel (%p286) target = $region40
        $region39: #{tpu_custom_call.1} parent=27 // pred_region
          %v289 = vld [vmem:[#allocation2] sm:$0x1]
          %v290 = vsel %vm284, %v289, 0.0
          %291 = vadd.xlane.f32.xlu0 %v290
          %v292 = vpop.xlane.xlu0 %291
          %v293 = vrot.slane %v292, 4
          %v294 = vadd.f32 %v292, %v293
          %v295 = vrot.slane %v294, 2
          %v296 = vadd.f32 %v294, %v295
          %v297 = vrot.slane %v296, 1
          %v298 = vadd.f32 %v296, %v297
          %s299 = vtos %v298
          %s300 = scvt.s32.f32 %s220
          %v301 = vstv %s300
          %v302 = vrcp.pop %v301
          %s303 = vtos %v302
          %s304 = smul.f32 %s299, %s303
          %vm305 = vcmp.eq.s32.totalorder %v250, 0
          %vm306 = vcmp.eq.s32.totalorder %v276, 0
          %vm307 = vmand %vm305, %vm306
          %v308 = vstv %s304
          %v309 = vsel %vm307, %v308, 0.0
          %310 = vst [vmem:[%s207] sm:$0xff] %v309
        $region40: #{tpu_custom_call.1} parent=27 // pred_fallthru
          _
        %s311 = sand.u32 %s105, 1
        %s312 = scalar_lea.sflag [#allocation7], %s311
        %s313 = sand.u32 %s105, 1
        %s314 = smul.addr %s313, 8
        %s315 = scalar_lea.vmem [#allocation8], %s314
        // Predicated region
        $region41: #{tpu_custom_call.1} parent=27 // pred_check
          %p316 = pneg %p115
        $region42: #{tpu_custom_call.1} parent=27 // pred_check_branch
          %318 = sbr.rel (%p316) target = $region44
        $region43: #{tpu_custom_call.1} parent=27 // pred_region
          %s320 = ssub.s32 128, 128
          %321 = vsyncadd %s312, %s320
          %s322 = smul.addr %s25, 128
          %s323 = scalar_lea.hbm %s3, %s322
          %s325 = sshll.u32 %s315, 4
          %s326 = int_to_ptr.vmem [resolvable:$true] %s325
          %328 = dma.vmem_to_hbm [thread:$0]  %s326, 128, %s323, %s312
        $region44: #{tpu_custom_call.1} parent=27 // pred_fallthru
          _
      $region28: #{tpu_custom_call.1} parent=5 // pred_fallthru
        _
      %p329 = scmp.le.s32.totalorder 2, %s16
      // Predicated region
      $region45: #{tpu_custom_call.1} parent=5 // pred_check
        %p330 = pneg %p329
      $region46: #{tpu_custom_call.1} parent=5 // pred_check_branch
        %332 = sbr.rel (%p330) target = $region48
      $region47: #{tpu_custom_call.1} parent=5 // pred_region
        %s333 = ssub.s32 %s16, 2
        // Predicated region
        $region49: #{tpu_custom_call.1} parent=47 // pred_check
          %p334 = pneg %p121
        $region50: #{tpu_custom_call.1} parent=47 // pred_check_branch
          %336 = sbr.rel (%p334) target = $region52
        $region51: #{tpu_custom_call.1} parent=47 // pred_region
          %s337 = sand.u32 %s106, 1
          %s338 = scalar_lea.sflag [#allocation7], %s337
          %s339 = sand.u32 %s106, 1
          %s340 = smul.addr %s339, 8
          %s341 = scalar_lea.vmem [#allocation8], %s340
          %342 = dma.done %s338, 128
        $region52: #{tpu_custom_call.1} parent=47 // pred_fallthru
          _
      $region48: #{tpu_custom_call.1} parent=5 // pred_fallthru
        _
    $region6: #{tpu_custom_call.1} parent=1 // loop_footer
      %s20 = sadd.s32 1, %s16
    $region7: #{tpu_custom_call.1} parent=1 // loop_footer_branch
      %15 = sbr.rel target = $region3
    $region8: #{tpu_custom_call.1} parent=1 // loop_exit
      _
    %343 = vsyncpa [#allocation6], 1
    %s344 = scalar_lea.sflag [#allocation6], 1
    %345 = vsyncpa %s344, 1
    %346 = vsyncpa [#allocation7], 1
    %s347 = scalar_lea.sflag [#allocation7], 1
    %348 = vsyncpa %s347, 1

</llo_original>
